<compile_context>
chip_gen: v5e
topology: v5e:2x2
jax: 0.10.0
libtpu: 0.0.40
codegen_flags: <defaults>
</compile_context>

<pallas_src>
import functools

import jax
import jax.numpy as jnp
from jax.experimental import pallas as pl
from jax.experimental.pallas import tpu as pltpu


def _round_up(x, m):
    return ((x + m - 1) // m) * m


def _pick_tile(n, cap):
    # Largest tile <= cap that divides n (n is always a multiple of 128 here).
    for t in (512, 256, 128):
        if t <= cap and n % t == 0:
            return t
    return n


# ---------------------------------------------------------------------------
# Fused kernel: all LightGCN layers + running layer-sum + final mean scaling.
#   grid = (n_layers, N/tm, N/tk); every axis sequential on one core because
#   ego_cur / ego_next / the output layer-sum are shared full-array state.
# ---------------------------------------------------------------------------
def _lgcn_fused_kernel(adj_ref, ego0_ref, out_ref, ego_cur, ego_next, acc_ref,
                       *, tm, tk, inv_scale, ego_dtype):
    l = pl.program_id(0)
    i = pl.program_id(1)
    k = pl.program_id(2)
    nl = pl.num_programs(0)
    ni = pl.num_programs(1)
    nk = pl.num_programs(2)

    # One-time init: load ego_0 into resident VMEM state and seed the layer-sum
    # (which lives in the resident, constant-index output block).
    @pl.when((l == 0) & (i == 0) & (k == 0))
    def _():
        ego_cur[...] = ego0_ref[...].astype(ego_dtype)
        out_ref[...] = ego0_ref[...]

    # Contraction over k:  acc += adj[i, k] @ ego_cur[k]
    @pl.when(k == 0)
    def _():
        acc_ref[...] = jnp.zeros_like(acc_ref)

    col0 = pl.multiple_of(k * tk, tk)
    acc_ref[...] += jnp.dot(
        adj_ref[...],
        ego_cur[pl.ds(col0, tk), :],
        preferred_element_type=jnp.float32,
    )

    # Row-block epilogue: commit new ego rows, bump the running layer-sum.
    @pl.when(k == nk - 1)
    def _():
        row0 = pl.multiple_of(i * tm, tm)
        ego_next[pl.ds(row0, tm), :] = acc_ref[...].astype(ego_dtype)
        out_ref[pl.ds(row0, tm), :] += acc_ref[...]

    # End of layer: publish ego_next as the new ego_cur.
    @pl.when((i == ni - 1) & (k == nk - 1))
    def _():
        ego_cur[...] = ego_next[...]

    # Very last grid step: fused mean over (n_layers + 1) contributions.
    @pl.when((l == nl - 1) & (i == ni - 1) & (k == nk - 1))
    def _():
        out_ref[...] = out_ref[...] * inv_scale


# ---------------------------------------------------------------------------
# LGCN_Encoder.forward equivalent
# ---------------------------------------------------------------------------
def lgcn_encoder_forward(norm_adj, user_embeddings, item_embeddings, *,
                         user_num, n_layers, use_bf16=False,
                         tm_req=512, tk_req=512):
    del user_num  # final split + re-concat in the torch module is an identity
    assert n_layers >= 1

    ego0 = jnp.concatenate([user_embeddings, item_embeddings], axis=0).astype(jnp.float32)
    N, D = ego0.shape
    adj = jnp.asarray(norm_adj, dtype=jnp.float32)
    assert adj.shape == (N, N)

    # Pad rows to a multiple of 128 (tile alignment; zero rows/cols are inert) and
    # the feature dim to a multiple of 128 (lane-dense stores, no masked vst).
    np_, dp = _round_up(N, 128), _round_up(D, 128)
    if np_ != N:
        adj = jnp.pad(adj, ((0, np_ - N), (0, np_ - N)))
        ego0 = jnp.pad(ego0, ((0, np_ - N), (0, 0)))
    if dp != D:
        ego0 = jnp.pad(ego0, ((0, 0), (0, dp - D)))

    ego_dtype = jnp.bfloat16 if use_bf16 else jnp.float32
    adj_in = adj.astype(ego_dtype)            # halves the dominant HBM stream in bf16 mode

    tm = _pick_tile(np_, tm_req)
    tk = _pick_tile(np_, tk_req)
    grid = (n_layers, np_ // tm, np_ // tk)

    itm = jnp.dtype(ego_dtype).itemsize
    est_vmem = (
        2 * np_ * dp * itm          # ego_cur + ego_next scratch
        + tm * dp * 4               # f32 row-block accumulator
        + 2 * np_ * dp * 4          # ego0 input block (resident)
        + 2 * np_ * dp * 4          # output / layer-sum block (resident)
        + 2 * tm * tk * itm         # double-buffered adj tiles
    )
    vmem_limit = int(min(max(2 * est_vmem, 32 * 1024 * 1024), 60 * 1024 * 1024))

    kernel = functools.partial(
        _lgcn_fused_kernel,
        tm=tm, tk=tk, inv_scale=1.0 / float(n_layers + 1), ego_dtype=ego_dtype,
    )

    out = pl.pallas_call(
        kernel,
        out_shape=jax.ShapeDtypeStruct((np_, dp), jnp.float32),
        grid_spec=pltpu.PrefetchScalarGridSpec(
            num_scalar_prefetch=0,
            grid=grid,
            in_specs=[
                # adjacency tiles streamed per (layer, row-block, col-block)
                pl.BlockSpec((tm, tk), lambda l, i, k: (i, k)),
                # initial embeddings: constant index -> fetched once, VMEM resident
                pl.BlockSpec((np_, dp), lambda l, i, k: (0, 0)),
            ],
            # running layer-sum lives in the resident output block (single writeback)
            out_specs=pl.BlockSpec((np_, dp), lambda l, i, k: (0, 0)),
            scratch_shapes=[
                pltpu.VMEM((np_, dp), ego_dtype),     # ego_cur
                pltpu.VMEM((np_, dp), ego_dtype),     # ego_next
                pltpu.VMEM((tm, dp), jnp.float32),    # per-row-block matmul accumulator
            ],
        ),
        compiler_params=pltpu.CompilerParams(
            # shared full-array VMEM state across the whole grid -> sequential axes
            dimension_semantics=("arbitrary", "arbitrary", "arbitrary"),
            vmem_limit_bytes=vmem_limit,
        ),
    )(adj_in, ego0)

    return out[:N, :D]


# ---------------------------------------------------------------------------
# Pure-JAX reference (mirrors the PyTorch forward exactly)
# ---------------------------------------------------------------------------
def lgcn_reference(norm_adj, user_embeddings, item_embeddings, *, user_num, n_layers):
    ego = jnp.concatenate([user_embeddings, item_embeddings], axis=0)
    all_embs = [ego]
    for _ in range(n_layers):
        ego = norm_adj @ ego
        all_embs.append(ego)
    stacked = jnp.stack(all_embs, axis=1)          # (N, L+1, D)
    mean_emb = jnp.mean(stacked, axis=1)           # (N, D)
    return jnp.concatenate([mean_emb[:user_num], mean_emb[user_num:]], axis=0)


if __name__ == "__main__":
    user_num = 48
    item_num = 80
    N = user_num + item_num        # 128
    D = 64
    n_layers = 3

    key = jax.random.PRNGKey(0)
    k_adj, k_user, k_item = jax.random.split(key, 3)

    # Deterministic synthetic symmetric-normalized bipartite adjacency (dense).
    r = jax.random.uniform(k_adj, (user_num, item_num), dtype=jnp.float32)
    r = (r > 0.7).astype(jnp.float32)              # sparse-ish interaction matrix
    adj = jnp.zeros((N, N), dtype=jnp.float32)
    adj = adj.at[:user_num, user_num:].set(r)
    adj = adj.at[user_num:, :user_num].set(r.T)
    deg = jnp.clip(adj.sum(axis=1), 1.0, None)
    d_inv_sqrt = 1.0 / jnp.sqrt(deg)
    norm_adj = adj * d_inv_sqrt[:, None] * d_inv_sqrt[None, :]

    user_embeddings = jax.random.normal(k_user, (user_num, D), dtype=jnp.float32) * 0.1
    item_embeddings = jax.random.normal(k_item, (item_num, D), dtype=jnp.float32) * 0.1

    ref = lgcn_reference(
        norm_adj, user_embeddings, item_embeddings,
        user_num=user_num, n_layers=n_layers,
    )

    # f32 path (tight tolerance).
    out = lgcn_encoder_forward(
        norm_adj, user_embeddings, item_embeddings,
        user_num=user_num, n_layers=n_layers, use_bf16=False,
    )
    out = jax.block_until_ready(out)
    assert out.shape == (N, D) and out.dtype == jnp.float32
    assert jnp.allclose(out, ref, atol=2e-5, rtol=2e-5)

    # bf16 compute path (f32 accumulation), relaxed tolerance.
    out_bf16 = lgcn_encoder_forward(
        norm_adj, user_embeddings, item_embeddings,
        user_num=user_num, n_layers=n_layers, use_bf16=True,
    )
    out_bf16 = jax.block_until_ready(out_bf16)
    assert out_bf16.shape == (N, D) and out_bf16.dtype == jnp.float32
    assert jnp.allclose(out_bf16, ref, atol=5e-2, rtol=5e-2)

    print("KERNEL_OK")
</pallas_src>

<mosaic_0001>
module attributes {stable_mosaic.version = 11 : i64} {
  func.func @_lgcn_fused_kernel(%arg0: i32, %arg1: i32, %arg2: i32, %arg3: memref<128x128xf32, #tpu.memory_space<vmem>>, %arg4: memref<128x128xf32, #tpu.memory_space<vmem>>, %arg5: memref<128x128xf32, #tpu.memory_space<vmem>>, %arg6: memref<128x128xf32, #tpu.memory_space<vmem>>, %arg7: memref<128x128xf32, #tpu.memory_space<vmem>>, %arg8: memref<128x128xf32, #tpu.memory_space<vmem>>) attributes {dimension_semantics = [#tpu.dimension_semantics<arbitrary>, #tpu.dimension_semantics<arbitrary>, #tpu.dimension_semantics<arbitrary>], iteration_bounds = array<i64: 3, 1, 1>, scalar_prefetch = 0 : i64, scratch_operands = 3 : i64, tpu.core_type = #tpu.core_type<tc>, window_params = [{transform_indices = @transform_0, window_bounds = array<i64: 128, 128>}, {pipeline_mode = #tpu.pipeline_mode<synchronous>, transform_indices = @transform_1, window_bounds = array<i64: 128, 128>}, {pipeline_mode = #tpu.pipeline_mode<synchronous>, transform_indices = @transform_2, window_bounds = array<i64: 128, 128>}]} {
    %c0_i32 = arith.constant 0 : i32
    %0 = arith.cmpi eq, %arg0, %c0_i32 : i32
    %c0_i32_0 = arith.constant 0 : i32
    %1 = arith.cmpi eq, %arg1, %c0_i32_0 : i32
    %2 = arith.andi %0, %1 : i1
    %c0_i32_1 = arith.constant 0 : i32
    %3 = arith.cmpi eq, %arg2, %c0_i32_1 : i32
    %4 = arith.andi %2, %3 : i1
    %5 = arith.extui %4 : i1 to i32
    %c0_i32_2 = arith.constant 0 : i32
    %6 = arith.cmpi ne, %5, %c0_i32_2 : i32
    scf.if %6 {
      %c0_19 = arith.constant 0 : index
      %c0_20 = arith.constant 0 : index
      %34 = vector.load %arg4[%c0_19, %c0_20] : memref<128x128xf32, #tpu.memory_space<vmem>>, vector<128x128xf32>
      %c0_21 = arith.constant 0 : index
      %c0_22 = arith.constant 0 : index
      %35 = vector.load %arg6[%c0_21, %c0_22] : memref<128x128xf32, #tpu.memory_space<vmem>>, vector<128x128xf32>
      tpu.vector_store %arg6[%c0_21, %c0_22], %34 {strides = array<i32>} : memref<128x128xf32, #tpu.memory_space<vmem>>, vector<128x128xf32>,
      %c0_23 = arith.constant 0 : index
      %c0_24 = arith.constant 0 : index
      %36 = vector.load %arg4[%c0_23, %c0_24] : memref<128x128xf32, #tpu.memory_space<vmem>>, vector<128x128xf32>
      %c0_25 = arith.constant 0 : index
      %c0_26 = arith.constant 0 : index
      %37 = vector.load %arg5[%c0_25, %c0_26] : memref<128x128xf32, #tpu.memory_space<vmem>>, vector<128x128xf32>
      tpu.vector_store %arg5[%c0_25, %c0_26], %36 {strides = array<i32>} : memref<128x128xf32, #tpu.memory_space<vmem>>, vector<128x128xf32>,
    } else {
    }
    %c0_i32_3 = arith.constant 0 : i32
    %7 = arith.cmpi eq, %arg2, %c0_i32_3 : i32
    %8 = arith.extui %7 : i1 to i32
    %c0_i32_4 = arith.constant 0 : i32
    %9 = arith.cmpi ne, %8, %c0_i32_4 : i32
    scf.if %9 {
      %cst_19 = arith.constant 0.000000e+00 : f32
      %34 = vector.broadcast %cst_19 : f32 to vector<128x128xf32>
      %c0_20 = arith.constant 0 : index
      %c0_21 = arith.constant 0 : index
      %35 = vector.load %arg8[%c0_20, %c0_21] : memref<128x128xf32, #tpu.memory_space<vmem>>, vector<128x128xf32>
      tpu.vector_store %arg8[%c0_20, %c0_21], %34 {strides = array<i32>} : memref<128x128xf32, #tpu.memory_space<vmem>>, vector<128x128xf32>,
    } else {
    }
    %c128_i32 = arith.constant 128 : i32
    %10 = arith.muli %arg2, %c128_i32 : i32
    %11 = tpu.assume_multiple %10, 128 : i32
    %c0 = arith.constant 0 : index
    %c0_5 = arith.constant 0 : index
    %12 = vector.load %arg8[%c0, %c0_5] : memref<128x128xf32, #tpu.memory_space<vmem>>, vector<128x128xf32>
    %c0_6 = arith.constant 0 : index
    %c0_7 = arith.constant 0 : index
    %13 = vector.load %arg3[%c0_6, %c0_7] : memref<128x128xf32, #tpu.memory_space<vmem>>, vector<128x128xf32>
    %14 = arith.index_cast %11 : i32 to index
    %c0_8 = arith.constant 0 : index
    %15 = vector.load %arg6[%14, %c0_8] : memref<128x128xf32, #tpu.memory_space<vmem>>, vector<128x128xf32>
    %cst = arith.constant dense<0.000000e+00> : vector<128x128xf32>
    %16 = tpu.matmul %13, %15, %cst {dimension_numbers = #tpu.dot_dimension_numbers<[1], [0], [0], [1], [0, 0, 1, 1], [], []>} : vector<128x128xf32>, vector<128x128xf32>, vector<128x128xf32> -> vector<128x128xf32>
    %17 = arith.addf %12, %16 : vector<128x128xf32>
    %c0_9 = arith.constant 0 : index
    %c0_10 = arith.constant 0 : index
    %18 = vector.load %arg8[%c0_9, %c0_10] : memref<128x128xf32, #tpu.memory_space<vmem>>, vector<128x128xf32>
    tpu.vector_store %arg8[%c0_9, %c0_10], %17 {strides = array<i32>} : memref<128x128xf32, #tpu.memory_space<vmem>>, vector<128x128xf32>,
    %c0_i32_11 = arith.constant 0 : i32
    %19 = arith.cmpi eq, %arg2, %c0_i32_11 : i32
    %20 = arith.extui %19 : i1 to i32
    %c0_i32_12 = arith.constant 0 : i32
    %21 = arith.cmpi ne, %20, %c0_i32_12 : i32
    scf.if %21 {
      %c128_i32_19 = arith.constant 128 : i32
      %34 = arith.muli %arg1, %c128_i32_19 : i32
      %35 = tpu.assume_multiple %34, 128 : i32
      %c0_20 = arith.constant 0 : index
      %c0_21 = arith.constant 0 : index
      %36 = vector.load %arg8[%c0_20, %c0_21] : memref<128x128xf32, #tpu.memory_space<vmem>>, vector<128x128xf32>
      %37 = arith.index_cast %35 : i32 to index
      %c0_22 = arith.constant 0 : index
      %38 = vector.load %arg7[%37, %c0_22] : memref<128x128xf32, #tpu.memory_space<vmem>>, vector<128x128xf32>
      tpu.vector_store %arg7[%37, %c0_22], %36 {strides = array<i32>} : memref<128x128xf32, #tpu.memory_space<vmem>>, vector<128x128xf32>,
      %39 = arith.index_cast %35 : i32 to index
      %c0_23 = arith.constant 0 : index
      %40 = vector.load %arg5[%39, %c0_23] : memref<128x128xf32, #tpu.memory_space<vmem>>, vector<128x128xf32>
      %c0_24 = arith.constant 0 : index
      %c0_25 = arith.constant 0 : index
      %41 = vector.load %arg8[%c0_24, %c0_25] : memref<128x128xf32, #tpu.memory_space<vmem>>, vector<128x128xf32>
      %42 = arith.addf %40, %41 : vector<128x128xf32>
      %43 = arith.index_cast %35 : i32 to index
      %c0_26 = arith.constant 0 : index
      %44 = vector.load %arg5[%43, %c0_26] : memref<128x128xf32, #tpu.memory_space<vmem>>, vector<128x128xf32>
      tpu.vector_store %arg5[%43, %c0_26], %42 {strides = array<i32>} : memref<128x128xf32, #tpu.memory_space<vmem>>, vector<128x128xf32>,
    } else {
    }
    %c0_i32_13 = arith.constant 0 : i32
    %22 = arith.cmpi eq, %arg1, %c0_i32_13 : i32
    %c0_i32_14 = arith.constant 0 : i32
    %23 = arith.cmpi eq, %arg2, %c0_i32_14 : i32
    %24 = arith.andi %22, %23 : i1
    %25 = arith.extui %24 : i1 to i32
    %c0_i32_15 = arith.constant 0 : i32
    %26 = arith.cmpi ne, %25, %c0_i32_15 : i32
    scf.if %26 {
      %c0_19 = arith.constant 0 : index
      %c0_20 = arith.constant 0 : index
      %34 = vector.load %arg7[%c0_19, %c0_20] : memref<128x128xf32, #tpu.memory_space<vmem>>, vector<128x128xf32>
      %c0_21 = arith.constant 0 : index
      %c0_22 = arith.constant 0 : index
      %35 = vector.load %arg6[%c0_21, %c0_22] : memref<128x128xf32, #tpu.memory_space<vmem>>, vector<128x128xf32>
      tpu.vector_store %arg6[%c0_21, %c0_22], %34 {strides = array<i32>} : memref<128x128xf32, #tpu.memory_space<vmem>>, vector<128x128xf32>,
    } else {
    }
    %c2_i32 = arith.constant 2 : i32
    %27 = arith.cmpi eq, %arg0, %c2_i32 : i32
    %c0_i32_16 = arith.constant 0 : i32
    %28 = arith.cmpi eq, %arg1, %c0_i32_16 : i32
    %29 = arith.andi %27, %28 : i1
    %c0_i32_17 = arith.constant 0 : i32
    %30 = arith.cmpi eq, %arg2, %c0_i32_17 : i32
    %31 = arith.andi %29, %30 : i1
    %32 = arith.extui %31 : i1 to i32
    %c0_i32_18 = arith.constant 0 : i32
    %33 = arith.cmpi ne, %32, %c0_i32_18 : i32
    scf.if %33 {
      %c0_19 = arith.constant 0 : index
      %c0_20 = arith.constant 0 : index
      %34 = vector.load %arg5[%c0_19, %c0_20] : memref<128x128xf32, #tpu.memory_space<vmem>>, vector<128x128xf32>
      %cst_21 = arith.constant 2.500000e-01 : f32
      %35 = vector.broadcast %cst_21 : f32 to vector<128x128xf32>
      %36 = arith.mulf %34, %35 : vector<128x128xf32>
      %c0_22 = arith.constant 0 : index
      %c0_23 = arith.constant 0 : index
      %37 = vector.load %arg5[%c0_22, %c0_23] : memref<128x128xf32, #tpu.memory_space<vmem>>, vector<128x128xf32>
      tpu.vector_store %arg5[%c0_22, %c0_23], %36 {strides = array<i32>} : memref<128x128xf32, #tpu.memory_space<vmem>>, vector<128x128xf32>,
    } else {
    }
    return
  }
  func.func @transform_0(%arg0: i32, %arg1: i32, %arg2: i32) -> (i32, i32) {
    %c0_i32 = arith.constant 0 : i32
    return %arg1, %arg2 : i32, i32
  }
  func.func @transform_1(%arg0: i32, %arg1: i32, %arg2: i32) -> (i32, i32) {
    %c0_i32 = arith.constant 0 : i32
    %c0_i32_0 = arith.constant 0 : i32
    %c0_i32_1 = arith.constant 0 : i32
    return %c0_i32, %c0_i32_0 : i32, i32
  }
  func.func @transform_2(%arg0: i32, %arg1: i32, %arg2: i32) -> (i32, i32) {
    %c0_i32 = arith.constant 0 : i32
    %c0_i32_0 = arith.constant 0 : i32
    %c0_i32_1 = arith.constant 0 : i32
    return %c0_i32, %c0_i32_0 : i32, i32
  }
}

</mosaic_0001>

<llo_original>
// kernel: tpu_custom_call.1
$region0: #{tpu_custom_call.1}
  #allocation0 [shape = 'u32[]', space=smem, size = 0x4, offset = 0x4, fixed_abs, tag = 'smem constant byte address 0x4 - core index']
  #allocation1 [shape = 'u32[72,128]{1,0:T(1,128)}', space=vmem, size = 0x9000, scoped, tag = 'internal scratch']
  #allocation2 [shape = 'f32[128,128]{1,0:T(8,128)}', space=vmem, size = 0x10000, scoped, tag = 'scratch operand']
  #allocation3 [shape = 'f32[128,128]{1,0:T(8,128)}', space=vmem, size = 0x10000, scoped, tag = 'scratch operand']
  #allocation4 [shape = 'f32[128,128]{1,0:T(8,128)}', space=vmem, size = 0x10000, scoped, tag = 'scratch operand']
  %s0 = inlined_call_operand.hbm [shape: f32[128,128], index: 0, kind: input, shape index: {}]
  %s1 = inlined_call_operand.hbm [shape: f32[128,128], index: 1, kind: input, shape index: {}]
  %s2 = inlined_call_operand.hbm [shape: f32[128,128], index: 2, kind: output, shape index: {}]
  %s3 = sld [smem:[#allocation0]]
  $region69: #{tpu_custom_call.1} parent=0
    _
  %s5 = ssub.s32 1, %s3
  %s6 = scalar_select 0, %s5, %s3
  $region1: #{tpu_custom_call.1} parent=0
    #allocation5 [shape = 'u8[65536]{0}', space=vmem, size = 0x10000, scoped, tag = 'input window, operand 0, single buffered']
    #allocation6 [shape = 's32[2]{0}', space=sflag, size = 0x8, scoped, tag = 'scoped memory for tpu_custom_call.1']
    #allocation7 [shape = 's32[2]{0}', space=sflag, size = 0x8, scoped, tag = 'scoped memory for tpu_custom_call.1']
    #allocation8 [shape = 'u8[65536]{0}', space=vmem, size = 0x10000, scoped, tag = 'input window, operand 1, single buffered']
    #allocation9 [shape = 's32[1]{0}', space=sflag, size = 0x4, scoped, tag = 'scoped memory for tpu_custom_call.1']
    #allocation10 [shape = 'u8[65536]{0}', space=vmem, size = 0x10000, scoped, tag = 'output window, operand 0, single buffered']
    %7 = vsyncpa [#allocation6], 0
    %8 = vsyncpa [#allocation9], 0
    %9 = vsyncpa [#allocation7], 0
    loop: start=0, step=1, limit=5
    $region2: #{tpu_custom_call.1} parent=1 // loop_pre_header
      _
    $region3: #{tpu_custom_call.1} parent=1 // loop_header
      %s11 = sphi 0, %s15
      %p12 = scmp.ge.s32.totalorder %s11, 5
      %s18 = sphi 0, %s37
      %s19 = sphi 0, %s33
      %s20 = sphi 0, %s29
      %s21 = sphi 0, %s18
      %s22 = sphi 0, %s19
      %s23 = sphi 0, %s20
      %s24 = sphi 0, %s21
      %s25 = sphi 0, %s22
      %s26 = sphi 0, %s23
      %s42 = sphi 0, %s44
      %s45 = sphi 0, %s42
      %s46 = sphi 0, %s45
      %s62 = sphi 0, %s46
      %s66 = sphi 0, %s66
      %s68 = sphi 0, %s66
      %s69 = sphi 0, %s68
      %s83 = sphi 0, %s69
      %s87 = sphi 0, %s87
      %s89 = sphi 0, %s87
      %s90 = sphi 0, %s89
      %s104 = sphi 0, %s90
    $region4: #{tpu_custom_call.1} parent=1 // loop_header_branch
      %14 = sbr.rel (%p12) target = $region8
    $region5: #{tpu_custom_call.1} parent=1 // loop_body
      %s16 = ssub.s32 %s11, 1
      %s17 = ssub.s32 %s11, 2
      %s27 = sadd.s32 1, %s20
      %p28 = scmp.ge.s32.totalorder %s27, 1
      %s29 = scalar_select %p28, 0, %s27
      %s30 = sadd.s32 1, %s19
      %s31 = scalar_select %p28, %s30, %s19
      %p32 = scmp.ge.s32.totalorder %s31, 1
      %s33 = scalar_select %p32, 0, %s31
      %s34 = sadd.s32 1, %s18
      %s35 = scalar_select %p32, %s34, %s18
      %p36 = scmp.ge.s32.totalorder %s35, 3
      %s37 = scalar_select %p36, 0, %s35
      %s38 = ssub.s32 %s19, %s33
      %s39 = ssub.s32 %s20, %s29
      %s40 = sor.u32 %s38, %s39
      %p41 = scmp.eq.s32.totalorder %s40, 0
      %s43 = sadd.s32 %s42, 1
      %s44 = scalar_select %p41, %s42, %s43
      %p47 = pneg %p41
      %p48 = scmp.eq.s32.totalorder %s11, 2
      %p49 = por %p47, %p48
      %p50 = scmp.ne.s32.totalorder %s42, %s45
      %p51 = scmp.eq.s32.totalorder %s11, 0
      %p52 = por %p50, %p51
      %p53 = scmp.ne.s32.totalorder %s42, %s45
      %p54 = scmp.eq.s32.totalorder %s16, 2
      %p55 = por %p53, %p54
      %p56 = scmp.ne.s32.totalorder %s45, %s46
      %p57 = scmp.eq.s32.totalorder %s16, 0
      %p58 = por %p56, %p57
      %p59 = scmp.ne.s32.totalorder %s45, %s46
      %p60 = scmp.eq.s32.totalorder %s17, 2
      %p61 = por %p59, %p60
      %p63 = scmp.ne.s32.totalorder %s46, %s62
      %p64 = scmp.eq.s32.totalorder %s17, 0
      %p65 = por %p63, %p64
      %s67 = sadd.s32 %s66, 1
      %p70 = scmp.eq.s32.totalorder %s11, 2
      %p71 = scmp.ne.s32.totalorder %s66, %s68
      %p72 = scmp.eq.s32.totalorder %s11, 0
      %p73 = por %p71, %p72
      %p74 = scmp.ne.s32.totalorder %s66, %s68
      %p75 = scmp.eq.s32.totalorder %s16, 2
      %p76 = por %p74, %p75
      %p77 = scmp.ne.s32.totalorder %s68, %s69
      %p78 = scmp.eq.s32.totalorder %s16, 0
      %p79 = por %p77, %p78
      %p80 = scmp.ne.s32.totalorder %s68, %s69
      %p81 = scmp.eq.s32.totalorder %s17, 2
      %p82 = por %p80, %p81
      %p84 = scmp.ne.s32.totalorder %s69, %s83
      %p85 = scmp.eq.s32.totalorder %s17, 0
      %p86 = por %p84, %p85
      %s88 = sadd.s32 %s87, 1
      %p91 = scmp.eq.s32.totalorder %s11, 2
      %p92 = scmp.ne.s32.totalorder %s87, %s89
      %p93 = scmp.eq.s32.totalorder %s11, 0
      %p94 = por %p92, %p93
      %p95 = scmp.ne.s32.totalorder %s87, %s89
      %p96 = scmp.eq.s32.totalorder %s16, 2
      %p97 = por %p95, %p96
      %p98 = scmp.ne.s32.totalorder %s89, %s90
      %p99 = scmp.eq.s32.totalorder %s16, 0
      %p100 = por %p98, %p99
      %p101 = scmp.ne.s32.totalorder %s89, %s90
      %p102 = scmp.eq.s32.totalorder %s17, 2
      %p103 = por %p101, %p102
      %p105 = scmp.ne.s32.totalorder %s90, %s104
      %p106 = scmp.eq.s32.totalorder %s17, 0
      %p107 = por %p105, %p106
      %p108 = scmp.le.s32.totalorder 1, %s11
      %p109 = scmp.lt.s32.totalorder %s11, 4
      %p110 = pnand %p108, %p109
      %p111 = pneg %p110
      // Predicated region
      $region9: #{tpu_custom_call.1} parent=5 // pred_check
        _
      $region10: #{tpu_custom_call.1} parent=5 // pred_check_branch
        %113 = sbr.rel (%p110) target = $region12
      $region11: #{tpu_custom_call.1} parent=5 // pred_region
        %s114 = ssub.s32 %s11, 1
        // Predicated region
        $region13: #{tpu_custom_call.1} parent=11 // pred_check
          %p115 = pneg %p58
        $region14: #{tpu_custom_call.1} parent=11 // pred_check_branch
          %117 = sbr.rel (%p115) target = $region16
        $region15: #{tpu_custom_call.1} parent=11 // pred_region
          %s118 = smul.u32 16, %s22
          %120 = vsyncadd [#allocation6], 0
          %s121 = sadd.s32 %s23, %s118
          %s122 = smul.addr %s121, 8
          %s123 = scalar_lea.hbm %s0, %s122
          %s124 = sshll.u32 %s123, 4
          %s125 = int_to_ptr.hbm [resolvable:$true] %s124
          %s126 = sshll.u32 [#allocation5], 4
          %s127 = int_to_ptr.vmem [resolvable:$true] %s126
          %132 = dma.hbm_to_vmem [thread:$0]  %s125, 2048, %s127, [#allocation6], 128, 128, 8
        $region16: #{tpu_custom_call.1} parent=11 // pred_fallthru
          _
        // Predicated region
        $region17: #{tpu_custom_call.1} parent=11 // pred_check
          %p133 = pneg %p79
        $region18: #{tpu_custom_call.1} parent=11 // pred_check_branch
          %135 = sbr.rel (%p133) target = $region20
        $region19: #{tpu_custom_call.1} parent=11 // pred_region
          %137 = vsyncadd [#allocation9], 0
          %s138 = sshll.u32 %s1, 4
          %s139 = int_to_ptr.hbm [resolvable:$true] %s138
          %s140 = sshll.u32 [#allocation8], 4
          %s141 = int_to_ptr.vmem [resolvable:$true] %s140
          %146 = dma.hbm_to_vmem [thread:$0]  %s139, 2048, %s141, [#allocation9], 128, 128, 8
        $region20: #{tpu_custom_call.1} parent=11 // pred_fallthru
          _
      $region12: #{tpu_custom_call.1} parent=5 // pred_fallthru
        _
      %p147 = scmp.lt.s32.totalorder %s11, 3
      // Predicated region
      $region21: #{tpu_custom_call.1} parent=5 // pred_check
        %p148 = pneg %p147
      $region22: #{tpu_custom_call.1} parent=5 // pred_check_branch
        %150 = sbr.rel (%p148) target = $region24
      $region23: #{tpu_custom_call.1} parent=5 // pred_region
        _
      $region24: #{tpu_custom_call.1} parent=5 // pred_fallthru
        _
      %p151 = scmp.le.s32.totalorder 1, %s11
      %p152 = scmp.lt.s32.totalorder %s11, 4
      %p153 = pnand %p151, %p152
      %p154 = pneg %p153
      // Predicated region
      $region25: #{tpu_custom_call.1} parent=5 // pred_check
        _
      $region26: #{tpu_custom_call.1} parent=5 // pred_check_branch
        %156 = sbr.rel (%p153) target = $region28
      $region27: #{tpu_custom_call.1} parent=5 // pred_region
        %s157 = ssub.s32 %s11, 1
        // Predicated region
        $region29: #{tpu_custom_call.1} parent=27 // pred_check
          %p158 = pneg %p58
        $region30: #{tpu_custom_call.1} parent=27 // pred_check_branch
          %160 = sbr.rel (%p158) target = $region32
        $region31: #{tpu_custom_call.1} parent=27 // pred_region
          %162 = dma.done [#allocation6], 2048
        $region32: #{tpu_custom_call.1} parent=27 // pred_fallthru
          _
        // Predicated region
        $region33: #{tpu_custom_call.1} parent=27 // pred_check
          %p163 = pneg %p79
        $region34: #{tpu_custom_call.1} parent=27 // pred_check_branch
          %165 = sbr.rel (%p163) target = $region36
        $region35: #{tpu_custom_call.1} parent=27 // pred_region
          %167 = dma.done [#allocation9], 2048
        $region36: #{tpu_custom_call.1} parent=27 // pred_fallthru
          _
        %p168 = pneg %p58
        %p169 = pneg %p55
        %p170 = pneg %p79
        %p171 = pneg %p76
        %p172 = pneg %p100
        %p173 = pneg %p97
        %s174 = smul.u32 16, %s22
        %p175 = scmp.eq.s32.totalorder %s21, 0
        %p176 = scmp.eq.s32.totalorder %s22, 0
        %p177 = pnand %p175, %p176
        %p178 = pneg %p177
        %p179 = scmp.eq.s32.totalorder %s23, 0
        %p180 = pnand %p178, %p179
        %p181 = pneg %p180
        // Predicated region
        $region37: #{tpu_custom_call.1} parent=27 // pred_check
          _
        $region38: #{tpu_custom_call.1} parent=27 // pred_check_branch
          %183 = sbr.rel (%p180) target = $region40
        $region39: #{tpu_custom_call.1} parent=27 // pred_region
          %v184 = vld [vmem:[#allocation8] sm:$0xff]
          %v185 = vld [vmem:[#allocation8 + $0x8] sm:$0xff]
          %v186 = vld [vmem:[#allocation8 + $0x10] sm:$0xff]
          %v187 = vld [vmem:[#allocation8 + $0x18] sm:$0xff]
          %v188 = vld [vmem:[#allocation8 + $0x20] sm:$0xff]
          %v189 = vld [vmem:[#allocation8 + $0x28] sm:$0xff]
          %v190 = vld [vmem:[#allocation8 + $0x30] sm:$0xff]
          %v191 = vld [vmem:[#allocation8 + $0x38] sm:$0xff]
          %v192 = vld [vmem:[#allocation8 + $0x40] sm:$0xff]
          %v193 = vld [vmem:[#allocation8 + $0x48] sm:$0xff]
          %v194 = vld [vmem:[#allocation8 + $0x50] sm:$0xff]
          %v195 = vld [vmem:[#allocation8 + $0x58] sm:$0xff]
          %v196 = vld [vmem:[#allocation8 + $0x60] sm:$0xff]
          %v197 = vld [vmem:[#allocation8 + $0x68] sm:$0xff]
          %v198 = vld [vmem:[#allocation8 + $0x70] sm:$0xff]
          %v199 = vld [vmem:[#allocation8 + $0x78] sm:$0xff]
          %200 = vst [vmem:[#allocation2] sm:$0xff] %v184
          %201 = vst [vmem:[#allocation2 + $0x8] sm:$0xff] %v185
          %202 = vst [vmem:[#allocation2 + $0x10] sm:$0xff] %v186
          %203 = vst [vmem:[#allocation2 + $0x18] sm:$0xff] %v187
          %204 = vst [vmem:[#allocation2 + $0x20] sm:$0xff] %v188
          %205 = vst [vmem:[#allocation2 + $0x28] sm:$0xff] %v189
          %206 = vst [vmem:[#allocation2 + $0x30] sm:$0xff] %v190
          %207 = vst [vmem:[#allocation2 + $0x38] sm:$0xff] %v191
          %208 = vst [vmem:[#allocation2 + $0x40] sm:$0xff] %v192
          %209 = vst [vmem:[#allocation2 + $0x48] sm:$0xff] %v193
          %210 = vst [vmem:[#allocation2 + $0x50] sm:$0xff] %v194
          %211 = vst [vmem:[#allocation2 + $0x58] sm:$0xff] %v195
          %212 = vst [vmem:[#allocation2 + $0x60] sm:$0xff] %v196
          %213 = vst [vmem:[#allocation2 + $0x68] sm:$0xff] %v197
          %214 = vst [vmem:[#allocation2 + $0x70] sm:$0xff] %v198
          %215 = vst [vmem:[#allocation2 + $0x78] sm:$0xff] %v199
          %v216 = vld [vmem:[#allocation8] sm:$0xff]
          %v217 = vld [vmem:[#allocation8 + $0x8] sm:$0xff]
          %v218 = vld [vmem:[#allocation8 + $0x10] sm:$0xff]
          %v219 = vld [vmem:[#allocation8 + $0x18] sm:$0xff]
          %v220 = vld [vmem:[#allocation8 + $0x20] sm:$0xff]
          %v221 = vld [vmem:[#allocation8 + $0x28] sm:$0xff]
          %v222 = vld [vmem:[#allocation8 + $0x30] sm:$0xff]
          %v223 = vld [vmem:[#allocation8 + $0x38] sm:$0xff]
          %v224 = vld [vmem:[#allocation8 + $0x40] sm:$0xff]
          %v225 = vld [vmem:[#allocation8 + $0x48] sm:$0xff]
          %v226 = vld [vmem:[#allocation8 + $0x50] sm:$0xff]
          %v227 = vld [vmem:[#allocation8 + $0x58] sm:$0xff]
          %v228 = vld [vmem:[#allocation8 + $0x60] sm:$0xff]
          %v229 = vld [vmem:[#allocation8 + $0x68] sm:$0xff]
          %v230 = vld [vmem:[#allocation8 + $0x70] sm:$0xff]
          %v231 = vld [vmem:[#allocation8 + $0x78] sm:$0xff]
          %232 = vst [vmem:[#allocation10] sm:$0xff] %v216
          %233 = vst [vmem:[#allocation10 + $0x8] sm:$0xff] %v217
          %234 = vst [vmem:[#allocation10 + $0x10] sm:$0xff] %v218
          %235 = vst [vmem:[#allocation10 + $0x18] sm:$0xff] %v219
          %236 = vst [vmem:[#allocation10 + $0x20] sm:$0xff] %v220
          %237 = vst [vmem:[#allocation10 + $0x28] sm:$0xff] %v221
          %238 = vst [vmem:[#allocation10 + $0x30] sm:$0xff] %v222
          %239 = vst [vmem:[#allocation10 + $0x38] sm:$0xff] %v223
          %240 = vst [vmem:[#allocation10 + $0x40] sm:$0xff] %v224
          %241 = vst [vmem:[#allocation10 + $0x48] sm:$0xff] %v225
          %242 = vst [vmem:[#allocation10 + $0x50] sm:$0xff] %v226
          %243 = vst [vmem:[#allocation10 + $0x58] sm:$0xff] %v227
          %244 = vst [vmem:[#allocation10 + $0x60] sm:$0xff] %v228
          %245 = vst [vmem:[#allocation10 + $0x68] sm:$0xff] %v229
          %246 = vst [vmem:[#allocation10 + $0x70] sm:$0xff] %v230
          %247 = vst [vmem:[#allocation10 + $0x78] sm:$0xff] %v231
        $region40: #{tpu_custom_call.1} parent=27 // pred_fallthru
          _
        // Predicated region
        $region41: #{tpu_custom_call.1} parent=27 // pred_check
          %p248 = pneg %p179
        $region42: #{tpu_custom_call.1} parent=27 // pred_check_branch
          %250 = sbr.rel (%p248) target = $region44
        $region43: #{tpu_custom_call.1} parent=27 // pred_region
          %251 = vst [vmem:[#allocation4] sm:$0xff] 0.0
          %252 = vst [vmem:[#allocation4 + $0x8] sm:$0xff] 0.0
          %253 = vst [vmem:[#allocation4 + $0x10] sm:$0xff] 0.0
          %254 = vst [vmem:[#allocation4 + $0x18] sm:$0xff] 0.0
          %255 = vst [vmem:[#allocation4 + $0x20] sm:$0xff] 0.0
          %256 = vst [vmem:[#allocation4 + $0x28] sm:$0xff] 0.0
          %257 = vst [vmem:[#allocation4 + $0x30] sm:$0xff] 0.0
          %258 = vst [vmem:[#allocation4 + $0x38] sm:$0xff] 0.0
          %259 = vst [vmem:[#allocation4 + $0x40] sm:$0xff] 0.0
          %260 = vst [vmem:[#allocation4 + $0x48] sm:$0xff] 0.0
          %261 = vst [vmem:[#allocation4 + $0x50] sm:$0xff] 0.0
          %262 = vst [vmem:[#allocation4 + $0x58] sm:$0xff] 0.0
          %263 = vst [vmem:[#allocation4 + $0x60] sm:$0xff] 0.0
          %264 = vst [vmem:[#allocation4 + $0x68] sm:$0xff] 0.0
          %265 = vst [vmem:[#allocation4 + $0x70] sm:$0xff] 0.0
          %266 = vst [vmem:[#allocation4 + $0x78] sm:$0xff] 0.0
        $region44: #{tpu_custom_call.1} parent=27 // pred_fallthru
          _
        %s267 = smul.u32 %s23, 128
        %v268 = vld [vmem:[#allocation4] sm:$0xff]
        %v269 = vld [vmem:[#allocation4 + $0x8] sm:$0xff]
        %v270 = vld [vmem:[#allocation4 + $0x10] sm:$0xff]
        %v271 = vld [vmem:[#allocation4 + $0x18] sm:$0xff]
        %v272 = vld [vmem:[#allocation4 + $0x20] sm:$0xff]
        %v273 = vld [vmem:[#allocation4 + $0x28] sm:$0xff]
        %v274 = vld [vmem:[#allocation4 + $0x30] sm:$0xff]
        %v275 = vld [vmem:[#allocation4 + $0x38] sm:$0xff]
        %v276 = vld [vmem:[#allocation4 + $0x40] sm:$0xff]
        %v277 = vld [vmem:[#allocation4 + $0x48] sm:$0xff]
        %v278 = vld [vmem:[#allocation4 + $0x50] sm:$0xff]
        %v279 = vld [vmem:[#allocation4 + $0x58] sm:$0xff]
        %v280 = vld [vmem:[#allocation4 + $0x60] sm:$0xff]
        %v281 = vld [vmem:[#allocation4 + $0x68] sm:$0xff]
        %v282 = vld [vmem:[#allocation4 + $0x70] sm:$0xff]
        %v283 = vld [vmem:[#allocation4 + $0x78] sm:$0xff]
        %v284 = vld [vmem:[#allocation5] sm:$0xff]
        %v285 = vld [vmem:[#allocation5 + $0x8] sm:$0xff]
        %v286 = vld [vmem:[#allocation5 + $0x10] sm:$0xff]
        %v287 = vld [vmem:[#allocation5 + $0x18] sm:$0xff]
        %v288 = vld [vmem:[#allocation5 + $0x20] sm:$0xff]
        %v289 = vld [vmem:[#allocation5 + $0x28] sm:$0xff]
        %v290 = vld [vmem:[#allocation5 + $0x30] sm:$0xff]
        %v291 = vld [vmem:[#allocation5 + $0x38] sm:$0xff]
        %v292 = vld [vmem:[#allocation5 + $0x40] sm:$0xff]
        %v293 = vld [vmem:[#allocation5 + $0x48] sm:$0xff]
        %v294 = vld [vmem:[#allocation5 + $0x50] sm:$0xff]
        %v295 = vld [vmem:[#allocation5 + $0x58] sm:$0xff]
        %v296 = vld [vmem:[#allocation5 + $0x60] sm:$0xff]
        %v297 = vld [vmem:[#allocation5 + $0x68] sm:$0xff]
        %v298 = vld [vmem:[#allocation5 + $0x70] sm:$0xff]
        %v299 = vld [vmem:[#allocation5 + $0x78] sm:$0xff]
        %s300 = scalar_lea.vmem [#allocation2], %s267
        %v301 = vld [vmem:[%s300] sm:$0xff]
        %v302 = vld [vmem:[%s300 + $0x8] sm:$0xff]
        %v303 = vld [vmem:[%s300 + $0x10] sm:$0xff]
        %v304 = vld [vmem:[%s300 + $0x18] sm:$0xff]
        %v305 = vld [vmem:[%s300 + $0x20] sm:$0xff]
        %v306 = vld [vmem:[%s300 + $0x28] sm:$0xff]
        %v307 = vld [vmem:[%s300 + $0x30] sm:$0xff]
        %v308 = vld [vmem:[%s300 + $0x38] sm:$0xff]
        %v309 = vld [vmem:[%s300 + $0x40] sm:$0xff]
        %v310 = vld [vmem:[%s300 + $0x48] sm:$0xff]
        %v311 = vld [vmem:[%s300 + $0x50] sm:$0xff]
        %v312 = vld [vmem:[%s300 + $0x58] sm:$0xff]
        %v313 = vld [vmem:[%s300 + $0x60] sm:$0xff]
        %v314 = vld [vmem:[%s300 + $0x68] sm:$0xff]
        %v315 = vld [vmem:[%s300 + $0x70] sm:$0xff]
        %v316 = vld [vmem:[%s300 + $0x78] sm:$0xff]
        %317 = vmatpush.msra.mxu0 %v316
        %318 = vmatpush.msra.mxu0 %v315
        %319 = vmatpush.msra.mxu0 %v314
        %320 = vmatpush.msra.mxu0 %v313
        %321 = vmatpush.msra.mxu0 %v312
        %322 = vmatpush.msra.mxu0 %v311
        %323 = vmatpush.msra.mxu0 %v310
        %324 = vmatpush.msra.mxu0 %v309
        %325 = vmatpush.msra.mxu0 %v308
        %326 = vmatpush.msra.mxu0 %v307
        %327 = vmatpush.msra.mxu0 %v306
        %328 = vmatpush.msra.mxu0 %v305
        %329 = vmatpush.msra.mxu0 %v304
        %330 = vmatpush.msra.mxu0 %v303
        %331 = vmatpush.msra.mxu0 %v302
        %332 = vmatpush.msra.mxu0 %v301
        %333 = vmatmul.f32.gmra.mxu0 %v284
        %v334 = vpop.f32.mrf.mxu0
        %v335 = vadd.f32 0.0, %v334
        %336 = vmatmul.f32.gmra.mxu0 %v285
        %v337 = vpop.f32.mrf.mxu0
        %v338 = vadd.f32 0.0, %v337
        %339 = vmatmul.f32.gmra.mxu0 %v286
        %v340 = vpop.f32.mrf.mxu0
        %v341 = vadd.f32 0.0, %v340
        %342 = vmatmul.f32.gmra.mxu0 %v287
        %v343 = vpop.f32.mrf.mxu0
        %v344 = vadd.f32 0.0, %v343
        %345 = vmatmul.f32.gmra.mxu0 %v288
        %v346 = vpop.f32.mrf.mxu0
        %v347 = vadd.f32 0.0, %v346
        %348 = vmatmul.f32.gmra.mxu0 %v289
        %v349 = vpop.f32.mrf.mxu0
        %v350 = vadd.f32 0.0, %v349
        %351 = vmatmul.f32.gmra.mxu0 %v290
        %v352 = vpop.f32.mrf.mxu0
        %v353 = vadd.f32 0.0, %v352
        %354 = vmatmul.f32.gmra.mxu0 %v291
        %v355 = vpop.f32.mrf.mxu0
        %v356 = vadd.f32 0.0, %v355
        %357 = vmatmul.f32.gmra.mxu0 %v292
        %v358 = vpop.f32.mrf.mxu0
        %v359 = vadd.f32 0.0, %v358
        %360 = vmatmul.f32.gmra.mxu0 %v293
        %v361 = vpop.f32.mrf.mxu0
        %v362 = vadd.f32 0.0, %v361
        %363 = vmatmul.f32.gmra.mxu0 %v294
        %v364 = vpop.f32.mrf.mxu0
        %v365 = vadd.f32 0.0, %v364
        %366 = vmatmul.f32.gmra.mxu0 %v295
        %v367 = vpop.f32.mrf.mxu0
        %v368 = vadd.f32 0.0, %v367
        %369 = vmatmul.f32.gmra.mxu0 %v296
        %v370 = vpop.f32.mrf.mxu0
        %v371 = vadd.f32 0.0, %v370
        %372 = vmatmul.f32.gmra.mxu0 %v297
        %v373 = vpop.f32.mrf.mxu0
        %v374 = vadd.f32 0.0, %v373
        %375 = vmatmul.f32.gmra.mxu0 %v298
        %v376 = vpop.f32.mrf.mxu0
        %v377 = vadd.f32 0.0, %v376
        %378 = vmatmul.f32.gmra.mxu0 %v299
        %v379 = vpop.f32.mrf.mxu0
        %v380 = vadd.f32 0.0, %v379
        %381 = vdwg.mxu0
        %v382 = vadd.f32 %v268, %v335
        %v383 = vadd.f32 %v269, %v338
        %v384 = vadd.f32 %v270, %v341
        %v385 = vadd.f32 %v271, %v344
        %v386 = vadd.f32 %v272, %v347
        %v387 = vadd.f32 %v273, %v350
        %v388 = vadd.f32 %v274, %v353
        %v389 = vadd.f32 %v275, %v356
        %v390 = vadd.f32 %v276, %v359
        %v391 = vadd.f32 %v277, %v362
        %v392 = vadd.f32 %v278, %v365
        %v393 = vadd.f32 %v279, %v368
        %v394 = vadd.f32 %v280, %v371
        %v395 = vadd.f32 %v281, %v374
        %v396 = vadd.f32 %v282, %v377
        %v397 = vadd.f32 %v283, %v380
        %398 = vst [vmem:[#allocation4] sm:$0xff] %v382
        %399 = vst [vmem:[#allocation4 + $0x8] sm:$0xff] %v383
        %400 = vst [vmem:[#allocation4 + $0x10] sm:$0xff] %v384
        %401 = vst [vmem:[#allocation4 + $0x18] sm:$0xff] %v385
        %402 = vst [vmem:[#allocation4 + $0x20] sm:$0xff] %v386
        %403 = vst [vmem:[#allocation4 + $0x28] sm:$0xff] %v387
        %404 = vst [vmem:[#allocation4 + $0x30] sm:$0xff] %v388
        %405 = vst [vmem:[#allocation4 + $0x38] sm:$0xff] %v389
        %406 = vst [vmem:[#allocation4 + $0x40] sm:$0xff] %v390
        %407 = vst [vmem:[#allocation4 + $0x48] sm:$0xff] %v391
        %408 = vst [vmem:[#allocation4 + $0x50] sm:$0xff] %v392
        %409 = vst [vmem:[#allocation4 + $0x58] sm:$0xff] %v393
        %410 = vst [vmem:[#allocation4 + $0x60] sm:$0xff] %v394
        %411 = vst [vmem:[#allocation4 + $0x68] sm:$0xff] %v395
        %412 = vst [vmem:[#allocation4 + $0x70] sm:$0xff] %v396
        %413 = vst [vmem:[#allocation4 + $0x78] sm:$0xff] %v397
        // Predicated region
        $region45: #{tpu_custom_call.1} parent=27 // pred_check
          %p414 = pneg %p179
        $region46: #{tpu_custom_call.1} parent=27 // pred_check_branch
          %416 = sbr.rel (%p414) target = $region48
        $region47: #{tpu_custom_call.1} parent=27 // pred_region
          %s417 = smul.u32 %s22, 128
          %v418 = vld [vmem:[#allocation4] sm:$0xff]
          %v419 = vld [vmem:[#allocation4 + $0x8] sm:$0xff]
          %v420 = vld [vmem:[#allocation4 + $0x10] sm:$0xff]
          %v421 = vld [vmem:[#allocation4 + $0x18] sm:$0xff]
          %v422 = vld [vmem:[#allocation4 + $0x20] sm:$0xff]
          %v423 = vld [vmem:[#allocation4 + $0x28] sm:$0xff]
          %v424 = vld [vmem:[#allocation4 + $0x30] sm:$0xff]
          %v425 = vld [vmem:[#allocation4 + $0x38] sm:$0xff]
          %v426 = vld [vmem:[#allocation4 + $0x40] sm:$0xff]
          %v427 = vld [vmem:[#allocation4 + $0x48] sm:$0xff]
          %v428 = vld [vmem:[#allocation4 + $0x50] sm:$0xff]
          %v429 = vld [vmem:[#allocation4 + $0x58] sm:$0xff]
          %v430 = vld [vmem:[#allocation4 + $0x60] sm:$0xff]
          %v431 = vld [vmem:[#allocation4 + $0x68] sm:$0xff]
          %v432 = vld [vmem:[#allocation4 + $0x70] sm:$0xff]
          %v433 = vld [vmem:[#allocation4 + $0x78] sm:$0xff]
          %s434 = scalar_lea.vmem [#allocation3], %s417
          %435 = vst [vmem:[%s434] sm:$0xff] %v418
          %436 = vst [vmem:[%s434 + $0x8] sm:$0xff] %v419
          %437 = vst [vmem:[%s434 + $0x10] sm:$0xff] %v420
          %438 = vst [vmem:[%s434 + $0x18] sm:$0xff] %v421
          %439 = vst [vmem:[%s434 + $0x20] sm:$0xff] %v422
          %440 = vst [vmem:[%s434 + $0x28] sm:$0xff] %v423
          %441 = vst [vmem:[%s434 + $0x30] sm:$0xff] %v424
          %442 = vst [vmem:[%s434 + $0x38] sm:$0xff] %v425
          %443 = vst [vmem:[%s434 + $0x40] sm:$0xff] %v426
          %444 = vst [vmem:[%s434 + $0x48] sm:$0xff] %v427
          %445 = vst [vmem:[%s434 + $0x50] sm:$0xff] %v428
          %446 = vst [vmem:[%s434 + $0x58] sm:$0xff] %v429
          %447 = vst [vmem:[%s434 + $0x60] sm:$0xff] %v430
          %448 = vst [vmem:[%s434 + $0x68] sm:$0xff] %v431
          %449 = vst [vmem:[%s434 + $0x70] sm:$0xff] %v432
          %450 = vst [vmem:[%s434 + $0x78] sm:$0xff] %v433
          %s451 = scalar_lea.vmem [#allocation10], %s417
          %v452 = vld [vmem:[%s451] sm:$0xff]
          %v453 = vld [vmem:[%s451 + $0x8] sm:$0xff]
          %v454 = vld [vmem:[%s451 + $0x10] sm:$0xff]
          %v455 = vld [vmem:[%s451 + $0x18] sm:$0xff]
          %v456 = vld [vmem:[%s451 + $0x20] sm:$0xff]
          %v457 = vld [vmem:[%s451 + $0x28] sm:$0xff]
          %v458 = vld [vmem:[%s451 + $0x30] sm:$0xff]
          %v459 = vld [vmem:[%s451 + $0x38] sm:$0xff]
          %v460 = vld [vmem:[%s451 + $0x40] sm:$0xff]
          %v461 = vld [vmem:[%s451 + $0x48] sm:$0xff]
          %v462 = vld [vmem:[%s451 + $0x50] sm:$0xff]
          %v463 = vld [vmem:[%s451 + $0x58] sm:$0xff]
          %v464 = vld [vmem:[%s451 + $0x60] sm:$0xff]
          %v465 = vld [vmem:[%s451 + $0x68] sm:$0xff]
          %v466 = vld [vmem:[%s451 + $0x70] sm:$0xff]
          %v467 = vld [vmem:[%s451 + $0x78] sm:$0xff]
          %v468 = vld [vmem:[#allocation4] sm:$0xff]
          %v469 = vld [vmem:[#allocation4 + $0x8] sm:$0xff]
          %v470 = vld [vmem:[#allocation4 + $0x10] sm:$0xff]
          %v471 = vld [vmem:[#allocation4 + $0x18] sm:$0xff]
          %v472 = vld [vmem:[#allocation4 + $0x20] sm:$0xff]
          %v473 = vld [vmem:[#allocation4 + $0x28] sm:$0xff]
          %v474 = vld [vmem:[#allocation4 + $0x30] sm:$0xff]
          %v475 = vld [vmem:[#allocation4 + $0x38] sm:$0xff]
          %v476 = vld [vmem:[#allocation4 + $0x40] sm:$0xff]
          %v477 = vld [vmem:[#allocation4 + $0x48] sm:$0xff]
          %v478 = vld [vmem:[#allocation4 + $0x50] sm:$0xff]
          %v479 = vld [vmem:[#allocation4 + $0x58] sm:$0xff]
          %v480 = vld [vmem:[#allocation4 + $0x60] sm:$0xff]
          %v481 = vld [vmem:[#allocation4 + $0x68] sm:$0xff]
          %v482 = vld [vmem:[#allocation4 + $0x70] sm:$0xff]
          %v483 = vld [vmem:[#allocation4 + $0x78] sm:$0xff]
          %v484 = vadd.f32 %v452, %v468
          %v485 = vadd.f32 %v453, %v469
          %v486 = vadd.f32 %v454, %v470
          %v487 = vadd.f32 %v455, %v471
          %v488 = vadd.f32 %v456, %v472
          %v489 = vadd.f32 %v457, %v473
          %v490 = vadd.f32 %v458, %v474
          %v491 = vadd.f32 %v459, %v475
          %v492 = vadd.f32 %v460, %v476
          %v493 = vadd.f32 %v461, %v477
          %v494 = vadd.f32 %v462, %v478
          %v495 = vadd.f32 %v463, %v479
          %v496 = vadd.f32 %v464, %v480
          %v497 = vadd.f32 %v465, %v481
          %v498 = vadd.f32 %v466, %v482
          %v499 = vadd.f32 %v467, %v483
          %500 = vst [vmem:[%s451] sm:$0xff] %v484
          %501 = vst [vmem:[%s451 + $0x8] sm:$0xff] %v485
          %502 = vst [vmem:[%s451 + $0x10] sm:$0xff] %v486
          %503 = vst [vmem:[%s451 + $0x18] sm:$0xff] %v487
          %504 = vst [vmem:[%s451 + $0x20] sm:$0xff] %v488
          %505 = vst [vmem:[%s451 + $0x28] sm:$0xff] %v489
          %506 = vst [vmem:[%s451 + $0x30] sm:$0xff] %v490
          %507 = vst [vmem:[%s451 + $0x38] sm:$0xff] %v491
          %508 = vst [vmem:[%s451 + $0x40] sm:$0xff] %v492
          %509 = vst [vmem:[%s451 + $0x48] sm:$0xff] %v493
          %510 = vst [vmem:[%s451 + $0x50] sm:$0xff] %v494
          %511 = vst [vmem:[%s451 + $0x58] sm:$0xff] %v495
          %512 = vst [vmem:[%s451 + $0x60] sm:$0xff] %v496
          %513 = vst [vmem:[%s451 + $0x68] sm:$0xff] %v497
          %514 = vst [vmem:[%s451 + $0x70] sm:$0xff] %v498
          %515 = vst [vmem:[%s451 + $0x78] sm:$0xff] %v499
        $region48: #{tpu_custom_call.1} parent=27 // pred_fallthru
          _
        %p516 = pnand %p176, %p179
        %p517 = pneg %p516
        // Predicated region
        $region49: #{tpu_custom_call.1} parent=27 // pred_check
          _
        $region50: #{tpu_custom_call.1} parent=27 // pred_check_branch
          %519 = sbr.rel (%p516) target = $region52
        $region51: #{tpu_custom_call.1} parent=27 // pred_region
          %v520 = vld [vmem:[#allocation3] sm:$0xff]
          %v521 = vld [vmem:[#allocation3 + $0x8] sm:$0xff]
          %v522 = vld [vmem:[#allocation3 + $0x10] sm:$0xff]
          %v523 = vld [vmem:[#allocation3 + $0x18] sm:$0xff]
          %v524 = vld [vmem:[#allocation3 + $0x20] sm:$0xff]
          %v525 = vld [vmem:[#allocation3 + $0x28] sm:$0xff]
          %v526 = vld [vmem:[#allocation3 + $0x30] sm:$0xff]
          %v527 = vld [vmem:[#allocation3 + $0x38] sm:$0xff]
          %v528 = vld [vmem:[#allocation3 + $0x40] sm:$0xff]
          %v529 = vld [vmem:[#allocation3 + $0x48] sm:$0xff]
          %v530 = vld [vmem:[#allocation3 + $0x50] sm:$0xff]
          %v531 = vld [vmem:[#allocation3 + $0x58] sm:$0xff]
          %v532 = vld [vmem:[#allocation3 + $0x60] sm:$0xff]
          %v533 = vld [vmem:[#allocation3 + $0x68] sm:$0xff]
          %v534 = vld [vmem:[#allocation3 + $0x70] sm:$0xff]
          %v535 = vld [vmem:[#allocation3 + $0x78] sm:$0xff]
          %536 = vst [vmem:[#allocation2] sm:$0xff] %v520
          %537 = vst [vmem:[#allocation2 + $0x8] sm:$0xff] %v521
          %538 = vst [vmem:[#allocation2 + $0x10] sm:$0xff] %v522
          %539 = vst [vmem:[#allocation2 + $0x18] sm:$0xff] %v523
          %540 = vst [vmem:[#allocation2 + $0x20] sm:$0xff] %v524
          %541 = vst [vmem:[#allocation2 + $0x28] sm:$0xff] %v525
          %542 = vst [vmem:[#allocation2 + $0x30] sm:$0xff] %v526
          %543 = vst [vmem:[#allocation2 + $0x38] sm:$0xff] %v527
          %544 = vst [vmem:[#allocation2 + $0x40] sm:$0xff] %v528
          %545 = vst [vmem:[#allocation2 + $0x48] sm:$0xff] %v529
          %546 = vst [vmem:[#allocation2 + $0x50] sm:$0xff] %v530
          %547 = vst [vmem:[#allocation2 + $0x58] sm:$0xff] %v531
          %548 = vst [vmem:[#allocation2 + $0x60] sm:$0xff] %v532
          %549 = vst [vmem:[#allocation2 + $0x68] sm:$0xff] %v533
          %550 = vst [vmem:[#allocation2 + $0x70] sm:$0xff] %v534
          %551 = vst [vmem:[#allocation2 + $0x78] sm:$0xff] %v535
        $region52: #{tpu_custom_call.1} parent=27 // pred_fallthru
          _
        %p552 = scmp.eq.s32.totalorder %s21, 2
        %p553 = pnand %p552, %p176
        %p554 = pneg %p553
        %p555 = pnand %p554, %p179
        %p556 = pneg %p555
        // Predicated region
        $region53: #{tpu_custom_call.1} parent=27 // pred_check
          _
        $region54: #{tpu_custom_call.1} parent=27 // pred_check_branch
          %558 = sbr.rel (%p555) target = $region56
        $region55: #{tpu_custom_call.1} parent=27 // pred_region
          %v559 = vld [vmem:[#allocation10] sm:$0xff]
          %v560 = vld [vmem:[#allocation10 + $0x8] sm:$0xff]
          %v561 = vld [vmem:[#allocation10 + $0x10] sm:$0xff]
          %v562 = vld [vmem:[#allocation10 + $0x18] sm:$0xff]
          %v563 = vld [vmem:[#allocation10 + $0x20] sm:$0xff]
          %v564 = vld [vmem:[#allocation10 + $0x28] sm:$0xff]
          %v565 = vld [vmem:[#allocation10 + $0x30] sm:$0xff]
          %v566 = vld [vmem:[#allocation10 + $0x38] sm:$0xff]
          %v567 = vld [vmem:[#allocation10 + $0x40] sm:$0xff]
          %v568 = vld [vmem:[#allocation10 + $0x48] sm:$0xff]
          %v569 = vld [vmem:[#allocation10 + $0x50] sm:$0xff]
          %v570 = vld [vmem:[#allocation10 + $0x58] sm:$0xff]
          %v571 = vld [vmem:[#allocation10 + $0x60] sm:$0xff]
          %v572 = vld [vmem:[#allocation10 + $0x68] sm:$0xff]
          %v573 = vld [vmem:[#allocation10 + $0x70] sm:$0xff]
          %v574 = vld [vmem:[#allocation10 + $0x78] sm:$0xff]
          %v575 = vmul.f32 %v559, 0.25
          %v576 = vmul.f32 %v560, 0.25
          %v577 = vmul.f32 %v561, 0.25
          %v578 = vmul.f32 %v562, 0.25
          %v579 = vmul.f32 %v563, 0.25
          %v580 = vmul.f32 %v564, 0.25
          %v581 = vmul.f32 %v565, 0.25
          %v582 = vmul.f32 %v566, 0.25
          %v583 = vmul.f32 %v567, 0.25
          %v584 = vmul.f32 %v568, 0.25
          %v585 = vmul.f32 %v569, 0.25
          %v586 = vmul.f32 %v570, 0.25
          %v587 = vmul.f32 %v571, 0.25
          %v588 = vmul.f32 %v572, 0.25
          %v589 = vmul.f32 %v573, 0.25
          %v590 = vmul.f32 %v574, 0.25
          %591 = vst [vmem:[#allocation10] sm:$0xff] %v575
          %592 = vst [vmem:[#allocation10 + $0x8] sm:$0xff] %v576
          %593 = vst [vmem:[#allocation10 + $0x10] sm:$0xff] %v577
          %594 = vst [vmem:[#allocation10 + $0x18] sm:$0xff] %v578
          %595 = vst [vmem:[#allocation10 + $0x20] sm:$0xff] %v579
          %596 = vst [vmem:[#allocation10 + $0x28] sm:$0xff] %v580
          %597 = vst [vmem:[#allocation10 + $0x30] sm:$0xff] %v581
          %598 = vst [vmem:[#allocation10 + $0x38] sm:$0xff] %v582
          %599 = vst [vmem:[#allocation10 + $0x40] sm:$0xff] %v583
          %600 = vst [vmem:[#allocation10 + $0x48] sm:$0xff] %v584
          %601 = vst [vmem:[#allocation10 + $0x50] sm:$0xff] %v585
          %602 = vst [vmem:[#allocation10 + $0x58] sm:$0xff] %v586
          %603 = vst [vmem:[#allocation10 + $0x60] sm:$0xff] %v587
          %604 = vst [vmem:[#allocation10 + $0x68] sm:$0xff] %v588
          %605 = vst [vmem:[#allocation10 + $0x70] sm:$0xff] %v589
          %606 = vst [vmem:[#allocation10 + $0x78] sm:$0xff] %v590
        $region56: #{tpu_custom_call.1} parent=27 // pred_fallthru
          _
        // Predicated region
        $region57: #{tpu_custom_call.1} parent=27 // pred_check
          %p607 = pneg %p97
        $region58: #{tpu_custom_call.1} parent=27 // pred_check_branch
          %609 = sbr.rel (%p607) target = $region60
        $region59: #{tpu_custom_call.1} parent=27 // pred_region
          %611 = vsyncadd [#allocation7], 0
          %s612 = sshll.u32 [#allocation10], 4
          %s613 = int_to_ptr.vmem [resolvable:$true] %s612
          %s614 = sshll.u32 %s2, 4
          %s615 = int_to_ptr.hbm [resolvable:$true] %s614
          %620 = dma.vmem_to_hbm [thread:$0]  %s613, 2048, %s615, [#allocation7], 128, 128, 8
        $region60: #{tpu_custom_call.1} parent=27 // pred_fallthru
          _
        // Predicated region
        $region61: #{tpu_custom_call.1} parent=27 // pred_check
          %p621 = pneg %p97
        $region62: #{tpu_custom_call.1} parent=27 // pred_check_branch
          %623 = sbr.rel (%p621) target = $region64
        $region63: #{tpu_custom_call.1} parent=27 // pred_region
          %625 = dma.done [#allocation7], 2048
        $region64: #{tpu_custom_call.1} parent=27 // pred_fallthru
          _
      $region28: #{tpu_custom_call.1} parent=5 // pred_fallthru
        _
      %p626 = scmp.le.s32.totalorder 2, %s11
      // Predicated region
      $region65: #{tpu_custom_call.1} parent=5 // pred_check
        %p627 = pneg %p626
      $region66: #{tpu_custom_call.1} parent=5 // pred_check_branch
        %629 = sbr.rel (%p627) target = $region68
      $region67: #{tpu_custom_call.1} parent=5 // pred_region
        %s630 = ssub.s32 %s11, 2
      $region68: #{tpu_custom_call.1} parent=5 // pred_fallthru
        _
    $region6: #{tpu_custom_call.1} parent=1 // loop_footer
      %s15 = sadd.s32 1, %s11
    $region7: #{tpu_custom_call.1} parent=1 // loop_footer_branch
      %10 = sbr.rel target = $region3
    $region8: #{tpu_custom_call.1} parent=1 // loop_exit
      _
    %631 = vsyncpa [#allocation6], 1
    %s632 = scalar_lea.sflag [#allocation6], 1
    %633 = vsyncpa %s632, 1
    %634 = vsyncpa [#allocation9], 1
    %635 = vsyncpa [#allocation7], 1
    %s636 = scalar_lea.sflag [#allocation7], 1
    %637 = vsyncpa %s636, 1

</llo_original>
